<compile_context>
chip_gen: v7x
topology: tpu7x:2x2x1
jax: 0.10.0
libtpu: 0.0.40
codegen_flags: <defaults>
</compile_context>

<pallas_src>
import functools
import math

import jax
import jax.numpy as jnp
from jax.experimental import pallas as pl
from jax.experimental.pallas import tpu as pltpu

SQRT5 = math.sqrt(5.0)


def _round_up(x, m):
    return ((x + m - 1) // m) * m


def _matern52_kernel(x1_ref, x2_ref, o_ref, *, tm, tn):
    # x1_ref: VMEM (N1p, 1)  -- fully resident, pre-scaled by sqrt(5)/l
    # x2_ref: VMEM (1, N2p)  -- fully resident, pre-scaled by sqrt(5)/l
    # o_ref:  VMEM (tm, tn)  -- output tile of the Gram matrix
    row0 = pl.multiple_of(pl.program_id(0) * tm, tm)
    col0 = pl.multiple_of(pl.program_id(1) * tn, tn)
    x1 = x1_ref[pl.ds(row0, tm), :]          # (tm, 1)
    x2 = x2_ref[:, pl.ds(col0, tn)]          # (1, tn)
    t = jnp.abs(x1 - x2)                     # broadcast -> (tm, tn); already scaled
    # Horner form of 1 + t + t^2/3 :  1 + t*(1 + t/3)
    poly = 1.0 + t * (1.0 + t * jnp.float32(1.0 / 3.0))
    o_ref[...] = (poly * jnp.exp(-t)).astype(o_ref.dtype)


def matern52(x1, x2, length_scale, *, tm=256, tn=None, out_dtype=jnp.float32):
    """Matern 5/2 Gram matrix between flattened x1 and x2 (1-D feature)."""
    x1f = jnp.ravel(x1).astype(jnp.float32)
    x2f = jnp.ravel(x2).astype(jnp.float32)
    n1, n2 = x1f.shape[0], x2f.shape[0]

    # Lane-dense output tiles: take the whole row when N2 is moderate,
    # otherwise cap at 2048 lanes (2 MiB f32 tile -> 4 MiB double-buffered,
    # safe on every generation's scoped-VMEM default).
    if tn is None:
        tn = min(_round_up(n2, 128), 2048)
    tm = min(tm, _round_up(n1, 8))
    assert tm % 8 == 0, "tm must be a multiple of 8 (sublane tiling)"
    assert tn % 128 == 0, "tn must be a multiple of 128 (lane tiling)"

    # Megacore (v7x has 2 TensorCores): make sure the grid has >= 2 blocks in
    # total.  Only shrink a tile when no axis already provides >= 2 blocks.
    rows, cols = pl.cdiv(n1, tm), pl.cdiv(n2, tn)
    if rows * cols < 2:
        if n1 > 8:
            tm = max(8, _round_up((n1 + 1) // 2, 8))
        elif n2 > 128:
            tn = max(128, _round_up((n2 + 1) // 2, 128))
        rows, cols = pl.cdiv(n1, tm), pl.cdiv(n2, tn)

    # Pre-scale by sqrt(5)/length_scale in the wrapper: O(N1+N2) here removes
    # one VALU multiply per output element from the O(N1*N2) kernel.
    inv = jnp.float32(SQRT5) / jnp.asarray(length_scale, jnp.float32)
    x1f = x1f * inv
    x2f = x2f * inv

    # Pad the (VMEM-resident) inputs to tile multiples so boundary-block
    # pl.ds reads stay in bounds.  The OUTPUT is not padded.
    n1p, n2p = rows * tm, cols * tn
    if n1p != n1:
        x1f = jnp.pad(x1f, (0, n1p - n1))
    if n2p != n2:
        x2f = jnp.pad(x2f, (0, n2p - n2))

    x1_col = x1f.reshape(n1p, 1)             # column vector (VMEM resident)
    x2_row = x2f.reshape(1, n2p)             # row vector    (VMEM resident)

    out_bytes = jnp.dtype(out_dtype).itemsize
    # Explicit scoped-VMEM limit: double-buffered output tile + resident
    # inputs + margin, clamped to 64 MiB (smallest physical VMEM: v7x per-TC).
    vmem_needed = 2 * tm * tn * out_bytes + 2 * (n1p + n2p) * 4 + (4 << 20)
    vmem_limit = min(64 << 20, max(32 << 20, vmem_needed))

    kernel = functools.partial(_matern52_kernel, tm=tm, tn=tn)

    out = pl.pallas_call(
        kernel,
        out_shape=jax.ShapeDtypeStruct((n1, n2), out_dtype),
        grid_spec=pltpu.PrefetchScalarGridSpec(
            num_scalar_prefetch=0,
            grid=(rows, cols),
            in_specs=[
                # Full arrays, constant index_map -> DMA'd once, stay in VMEM.
                pl.BlockSpec((n1p, 1), lambda i, j: (0, 0)),
                pl.BlockSpec((1, n2p), lambda i, j: (0, 0)),
            ],
            out_specs=pl.BlockSpec((tm, tn), lambda i, j: (i, j)),
        ),
        compiler_params=pltpu.CompilerParams(
            dimension_semantics=("parallel", "parallel"),
            vmem_limit_bytes=vmem_limit,
        ),
        cost_estimate=pl.CostEstimate(
            flops=8 * n1 * n2,
            transcendentals=n1 * n2,
            bytes_accessed=out_bytes * n1 * n2 + 4 * (n1p + n2p),
        ),
    )(x1_col, x2_row)

    return out


def matern52_ref(x1, x2, length_scale):
    """Pure-JAX reference matching the PyTorch forward (in f32)."""
    x1f = jnp.ravel(x1).astype(jnp.float32)[:, None]
    x2f = jnp.ravel(x2).astype(jnp.float32)[None, :]
    r = jnp.abs(x1f - x2f)
    term = SQRT5 * r / jnp.float32(length_scale)
    return (1.0 + term + term ** 2 / 3.0) * jnp.exp(-term)


if __name__ == "__main__":
    key = jax.random.PRNGKey(0)
    k1, k2 = jax.random.split(key)

    # Deterministic "parameter" from the module __init__ (length_scale=0.5).
    length_scale = 0.5

    # Small example inputs; the module flattens them anyway (reshape(-1, 1)).
    # N2 = 300 deliberately exercises the boundary-block (masked store) path.
    x1 = jax.random.normal(k1, (2, 128), dtype=jnp.float32)   # -> N1 = 256
    x2 = jax.random.normal(k2, (300,), dtype=jnp.float32)     # -> N2 = 300

    out = matern52(x1, x2, length_scale)
    out = jax.block_until_ready(out)

    ref = matern52_ref(x1, x2, length_scale)
    assert out.shape == (256, 300)
    assert jnp.max(jnp.abs(out - ref)) < 1e-5, "mismatch vs reference"

    print("KERNEL_OK")
</pallas_src>

<mosaic_0001>
module attributes {stable_mosaic.version = 11 : i64} {
  func.func @_matern52_kernel(%arg0: i32, %arg1: i32, %arg2: memref<256x1xf32, #tpu.memory_space<vmem>>, %arg3: memref<1x384xf32, #tpu.memory_space<vmem>>, %arg4: memref<128x384xf32, #tpu.memory_space<vmem>>) attributes {dimension_semantics = [#tpu.dimension_semantics<parallel>, #tpu.dimension_semantics<parallel>], iteration_bounds = array<i64: 2, 1>, scalar_prefetch = 0 : i64, scratch_operands = 0 : i64, tpu.core_type = #tpu.core_type<tc>, window_params = [{pipeline_mode = #tpu.pipeline_mode<synchronous>, transform_indices = @transform_0, window_bounds = array<i64: 256, 1>}, {pipeline_mode = #tpu.pipeline_mode<synchronous>, transform_indices = @transform_1, window_bounds = array<i64: 1, 384>}, {transform_indices = @transform_2, window_bounds = array<i64: 128, 384>}]} {
    %c128_i32 = arith.constant 128 : i32
    %0 = arith.muli %arg0, %c128_i32 : i32
    %1 = tpu.assume_multiple %0, 128 : i32
    %c384_i32 = arith.constant 384 : i32
    %2 = arith.muli %arg1, %c384_i32 : i32
    %3 = tpu.assume_multiple %2, 384 : i32
    %4 = arith.index_cast %1 : i32 to index
    %c0 = arith.constant 0 : index
    %5 = vector.load %arg2[%4, %c0] : memref<256x1xf32, #tpu.memory_space<vmem>>, vector<128x1xf32>
    %c0_0 = arith.constant 0 : index
    %6 = arith.index_cast %3 : i32 to index
    %7 = vector.load %arg3[%c0_0, %6] : memref<1x384xf32, #tpu.memory_space<vmem>>, vector<1x384xf32>
    %8 = vector.broadcast %5 : vector<128x1xf32> to vector<128x384xf32>
    %9 = vector.broadcast %7 : vector<1x384xf32> to vector<128x384xf32>
    %10 = arith.subf %8, %9 : vector<128x384xf32>
    %11 = math.absf %10 : vector<128x384xf32>
    %cst = arith.constant 0.333333343 : f32
    %12 = vector.broadcast %cst : f32 to vector<128x384xf32>
    %13 = arith.mulf %11, %12 : vector<128x384xf32>
    %cst_1 = arith.constant 1.000000e+00 : f32
    %14 = vector.broadcast %cst_1 : f32 to vector<128x384xf32>
    %15 = arith.addf %14, %13 : vector<128x384xf32>
    %16 = arith.mulf %11, %15 : vector<128x384xf32>
    %cst_2 = arith.constant 1.000000e+00 : f32
    %17 = vector.broadcast %cst_2 : f32 to vector<128x384xf32>
    %18 = arith.addf %17, %16 : vector<128x384xf32>
    %cst_3 = arith.constant 0.000000e+00 : f32
    %19 = vector.broadcast %cst_3 : f32 to vector<128x384xf32>
    %20 = arith.subf %19, %11 : vector<128x384xf32>
    %21 = math.exp %20 : vector<128x384xf32>
    %22 = arith.mulf %18, %21 : vector<128x384xf32>
    %c0_4 = arith.constant 0 : index
    %c0_5 = arith.constant 0 : index
    %23 = vector.load %arg4[%c0_4, %c0_5] : memref<128x384xf32, #tpu.memory_space<vmem>>, vector<128x384xf32>
    tpu.vector_store %arg4[%c0_4, %c0_5], %22 {strides = array<i32>} : memref<128x384xf32, #tpu.memory_space<vmem>>, vector<128x384xf32>,
    return
  }
  func.func @transform_0(%arg0: i32, %arg1: i32) -> (i32, i32) {
    %c0_i32 = arith.constant 0 : i32
    %c0_i32_0 = arith.constant 0 : i32
    %c0_i32_1 = arith.constant 0 : i32
    return %c0_i32, %c0_i32_0 : i32, i32
  }
  func.func @transform_1(%arg0: i32, %arg1: i32) -> (i32, i32) {
    %c0_i32 = arith.constant 0 : i32
    %c0_i32_0 = arith.constant 0 : i32
    %c0_i32_1 = arith.constant 0 : i32
    return %c0_i32, %c0_i32_0 : i32, i32
  }
  func.func @transform_2(%arg0: i32, %arg1: i32) -> (i32, i32) {
    %c0_i32 = arith.constant 0 : i32
    return %arg0, %arg1 : i32, i32
  }
}

</mosaic_0001>

<llo_original>
// kernel: tpu_custom_call.1
$region0: #{tpu_custom_call.1}
  #allocation0 [shape = 'u32[]', space=smem, size = 0x4, offset = 0x4, fixed_abs, tag = 'smem constant byte address 0x4 - core index']
  #allocation1 [shape = 'u32[144,128]{1,0:T(1,128)}', space=vmem, size = 0x12000, scoped, tag = 'internal scratch']
  %s0 = inlined_call_operand.vmem [shape: f32[256,1], index: 0, kind: input, shape index: {}]
  %s1 = inlined_call_operand.vmem [shape: f32[1,384], index: 1, kind: input, shape index: {}]
  %s2 = inlined_call_operand.vmem [shape: f32[256,300], index: 2, kind: output, shape index: {}]
  %s3 = sld [smem:[#allocation0]]
  $region41: #{tpu_custom_call.1} parent=0
    _
  %s5 = ssub.s32 1, %s3
  %s6 = scalar_select 0, %s5, %s3
  loop: start=0, step=1, limit=4
  $region2: #{tpu_custom_call.1} parent=0 // loop_pre_header
    _
  $region3: #{tpu_custom_call.1} parent=0 // loop_header
    %s8 = sphi 0, %s12
    %p9 = scmp.ge.s32.totalorder %s8, 4
    %s15 = sphi 0, %s27
    %s16 = sphi 0, %s23
    %s17 = sphi 0, %s15
    %s18 = sphi 0, %s16
    %s19 = sphi 0, %s17
    %s20 = sphi 0, %s18
    %s28 = sphi 0, %s28
    %s30 = sphi 0, %s28
    %s31 = sphi 0, %s30
    %s45 = sphi 0, %s31
    %s49 = sphi 0, %s49
    %s51 = sphi 0, %s49
    %s52 = sphi 0, %s51
    %s66 = sphi 0, %s52
    %s74 = sphi 0, %s76
    %s77 = sphi 0, %s74
    %s78 = sphi 0, %s77
    %s94 = sphi 0, %s78
  $region4: #{tpu_custom_call.1} parent=0 // loop_header_branch
    %11 = sbr.rel (%p9) target = $region8
  $region5: #{tpu_custom_call.1} parent=0 // loop_body
    %s13 = ssub.s32 %s8, 1
    %s14 = ssub.s32 %s8, 2
    %s21 = sadd.s32 1, %s16
    %p22 = scmp.ge.s32.totalorder %s21, 1
    %s23 = scalar_select %p22, 0, %s21
    %s24 = sadd.s32 1, %s15
    %s25 = scalar_select %p22, %s24, %s15
    %p26 = scmp.ge.s32.totalorder %s25, 2
    %s27 = scalar_select %p26, 0, %s25
    %s29 = sadd.s32 %s28, 1
    %p32 = scmp.eq.s32.totalorder %s8, 1
    %p33 = scmp.ne.s32.totalorder %s28, %s30
    %p34 = scmp.eq.s32.totalorder %s8, 0
    %p35 = por %p33, %p34
    %p36 = scmp.ne.s32.totalorder %s28, %s30
    %p37 = scmp.eq.s32.totalorder %s13, 1
    %p38 = por %p36, %p37
    %p39 = scmp.ne.s32.totalorder %s30, %s31
    %p40 = scmp.eq.s32.totalorder %s13, 0
    %p41 = por %p39, %p40
    %p42 = scmp.ne.s32.totalorder %s30, %s31
    %p43 = scmp.eq.s32.totalorder %s14, 1
    %p44 = por %p42, %p43
    %p46 = scmp.ne.s32.totalorder %s31, %s45
    %p47 = scmp.eq.s32.totalorder %s14, 0
    %p48 = por %p46, %p47
    %s50 = sadd.s32 %s49, 1
    %p53 = scmp.eq.s32.totalorder %s8, 1
    %p54 = scmp.ne.s32.totalorder %s49, %s51
    %p55 = scmp.eq.s32.totalorder %s8, 0
    %p56 = por %p54, %p55
    %p57 = scmp.ne.s32.totalorder %s49, %s51
    %p58 = scmp.eq.s32.totalorder %s13, 1
    %p59 = por %p57, %p58
    %p60 = scmp.ne.s32.totalorder %s51, %s52
    %p61 = scmp.eq.s32.totalorder %s13, 0
    %p62 = por %p60, %p61
    %p63 = scmp.ne.s32.totalorder %s51, %s52
    %p64 = scmp.eq.s32.totalorder %s14, 1
    %p65 = por %p63, %p64
    %p67 = scmp.ne.s32.totalorder %s52, %s66
    %p68 = scmp.eq.s32.totalorder %s14, 0
    %p69 = por %p67, %p68
    %s70 = ssub.s32 %s15, %s27
    %s71 = ssub.s32 %s16, %s23
    %s72 = sor.u32 %s70, %s71
    %p73 = scmp.eq.s32.totalorder %s72, 0
    %s75 = sadd.s32 %s74, 1
    %s76 = scalar_select %p73, %s74, %s75
    %p79 = pneg %p73
    %p80 = scmp.eq.s32.totalorder %s8, 1
    %p81 = por %p79, %p80
    %p82 = scmp.ne.s32.totalorder %s74, %s77
    %p83 = scmp.eq.s32.totalorder %s8, 0
    %p84 = por %p82, %p83
    %p85 = scmp.ne.s32.totalorder %s74, %s77
    %p86 = scmp.eq.s32.totalorder %s13, 1
    %p87 = por %p85, %p86
    %p88 = scmp.ne.s32.totalorder %s77, %s78
    %p89 = scmp.eq.s32.totalorder %s13, 0
    %p90 = por %p88, %p89
    %p91 = scmp.ne.s32.totalorder %s77, %s78
    %p92 = scmp.eq.s32.totalorder %s14, 1
    %p93 = por %p91, %p92
    %p95 = scmp.ne.s32.totalorder %s78, %s94
    %p96 = scmp.eq.s32.totalorder %s14, 0
    %p97 = por %p95, %p96
    %p98 = scmp.le.s32.totalorder 1, %s8
    %p99 = scmp.lt.s32.totalorder %s8, 3
    %p100 = pnand %p98, %p99
    %p101 = pneg %p100
    // Predicated region
    $region9: #{tpu_custom_call.1} parent=5 // pred_check
      _
    $region10: #{tpu_custom_call.1} parent=5 // pred_check_branch
      %103 = sbr.rel (%p100) target = $region12
    $region11: #{tpu_custom_call.1} parent=5 // pred_region
      %s104 = ssub.s32 %s8, 1
      // Predicated region
      $region13: #{tpu_custom_call.1} parent=11 // pred_check
        %p105 = pneg %p41
      $region14: #{tpu_custom_call.1} parent=11 // pred_check_branch
        %107 = sbr.rel (%p105) target = $region16
      $region15: #{tpu_custom_call.1} parent=11 // pred_region
        _
      $region16: #{tpu_custom_call.1} parent=11 // pred_fallthru
        _
      // Predicated region
      $region17: #{tpu_custom_call.1} parent=11 // pred_check
        %p108 = pneg %p62
      $region18: #{tpu_custom_call.1} parent=11 // pred_check_branch
        %110 = sbr.rel (%p108) target = $region20
      $region19: #{tpu_custom_call.1} parent=11 // pred_region
        _
      $region20: #{tpu_custom_call.1} parent=11 // pred_fallthru
        _
    $region12: #{tpu_custom_call.1} parent=5 // pred_fallthru
      _
    %p111 = scmp.lt.s32.totalorder %s8, 2
    // Predicated region
    $region21: #{tpu_custom_call.1} parent=5 // pred_check
      %p112 = pneg %p111
    $region22: #{tpu_custom_call.1} parent=5 // pred_check_branch
      %114 = sbr.rel (%p112) target = $region24
    $region23: #{tpu_custom_call.1} parent=5 // pred_region
      _
    $region24: #{tpu_custom_call.1} parent=5 // pred_fallthru
      _
    %p115 = scmp.le.s32.totalorder 1, %s8
    %p116 = scmp.lt.s32.totalorder %s8, 3
    %p117 = pnand %p115, %p116
    %p118 = pneg %p117
    // Predicated region
    $region25: #{tpu_custom_call.1} parent=5 // pred_check
      _
    $region26: #{tpu_custom_call.1} parent=5 // pred_check_branch
      %120 = sbr.rel (%p117) target = $region28
    $region27: #{tpu_custom_call.1} parent=5 // pred_region
      %s121 = ssub.s32 %s8, 1
      %p122 = pneg %p41
      %p123 = pneg %p38
      %p124 = pneg %p62
      %p125 = pneg %p59
      %p126 = pneg %p90
      %p127 = pneg %p87
      %s128 = smul.u32 16, %s17
      %s129 = smul.u32 3, %s18
      %p130 = scmp.lt.s32.totalorder %s128, 31
      %s131 = scalar_select %p130, %s128, 31
      %p132 = scmp.lt.s32.totalorder %s129, 2
      %s133 = scalar_select %p132, %s129, 2
      %s134 = smul.addr %s131, 3
      %s135 = sadd.s32 %s133, %s134
      %s136 = smul.addr %s135, 8
      %s137 = scalar_lea.vmem %s2, %s136
      %s138 = smul.u32 16, %s17
      %s139 = smul.u32 3, %s18
      %p140 = scmp.lt.s32.totalorder %s138, 31
      %s141 = scalar_select %p140, %s138, 31
      %p142 = scmp.lt.s32.totalorder %s139, 2
      %s143 = scalar_select %p142, %s139, 2
      %s144 = smul.addr %s141, 3
      %s145 = sadd.s32 %s143, %s144
      %s146 = smul.addr %s145, 8
      %s147 = scalar_lea.vmem %s2, %s146
      %s148 = smul.u32 16, %s17
      %s149 = smul.u32 3, %s18
      %s150 = smul.u32 %s17, 128
      %s151 = smul.u32 %s18, 384
      %s152 = scalar_lea.vmem %s0, %s150
      %v153 = vld [vmem:[%s152] sm:$0xff]
      %v154 = vld [vmem:[%s152 + $0x8] sm:$0xff]
      %v155 = vld [vmem:[%s152 + $0x10] sm:$0xff]
      %v156 = vld [vmem:[%s152 + $0x18] sm:$0xff]
      %v157 = vld [vmem:[%s152 + $0x20] sm:$0xff]
      %v158 = vld [vmem:[%s152 + $0x28] sm:$0xff]
      %v159 = vld [vmem:[%s152 + $0x30] sm:$0xff]
      %v160 = vld [vmem:[%s152 + $0x38] sm:$0xff]
      %v161 = vld [vmem:[%s152 + $0x40] sm:$0xff]
      %v162 = vld [vmem:[%s152 + $0x48] sm:$0xff]
      %v163 = vld [vmem:[%s152 + $0x50] sm:$0xff]
      %v164 = vld [vmem:[%s152 + $0x58] sm:$0xff]
      %v165 = vld [vmem:[%s152 + $0x60] sm:$0xff]
      %v166 = vld [vmem:[%s152 + $0x68] sm:$0xff]
      %v167 = vld [vmem:[%s152 + $0x70] sm:$0xff]
      %v168 = vld [vmem:[%s152 + $0x78] sm:$0xff]
      %s169 = sshra.s32 %s151, 7
      %s170 = sand.u32 %s151, 127
      %s171 = scalar_lea.vmem %s1, %s169
      %v172 = vld [vmem:[%s171] sm:$0x7]
      %174 = vset.pattern.permute.xlu0 0
      %175 = vperm.xlu0 %174, %v153
      %v176 = vpop.permute.xlu0 %175
      %179 = vset.pattern.permute.xlu0 0
      %180 = vperm.xlu0 %179, %v154
      %v181 = vpop.permute.xlu0 %180
      %184 = vset.pattern.permute.xlu0 0
      %185 = vperm.xlu0 %184, %v155
      %v186 = vpop.permute.xlu0 %185
      %189 = vset.pattern.permute.xlu0 0
      %190 = vperm.xlu0 %189, %v156
      %v191 = vpop.permute.xlu0 %190
      %194 = vset.pattern.permute.xlu0 0
      %195 = vperm.xlu0 %194, %v157
      %v196 = vpop.permute.xlu0 %195
      %199 = vset.pattern.permute.xlu0 0
      %200 = vperm.xlu0 %199, %v158
      %v201 = vpop.permute.xlu0 %200
      %204 = vset.pattern.permute.xlu0 0
      %205 = vperm.xlu0 %204, %v159
      %v206 = vpop.permute.xlu0 %205
      %209 = vset.pattern.permute.xlu0 0
      %210 = vperm.xlu0 %209, %v160
      %v211 = vpop.permute.xlu0 %210
      %214 = vset.pattern.permute.xlu0 0
      %215 = vperm.xlu0 %214, %v161
      %v216 = vpop.permute.xlu0 %215
      %219 = vset.pattern.permute.xlu0 0
      %220 = vperm.xlu0 %219, %v162
      %v221 = vpop.permute.xlu0 %220
      %224 = vset.pattern.permute.xlu0 0
      %225 = vperm.xlu0 %224, %v163
      %v226 = vpop.permute.xlu0 %225
      %229 = vset.pattern.permute.xlu0 0
      %230 = vperm.xlu0 %229, %v164
      %v231 = vpop.permute.xlu0 %230
      %234 = vset.pattern.permute.xlu0 0
      %235 = vperm.xlu0 %234, %v165
      %v236 = vpop.permute.xlu0 %235
      %239 = vset.pattern.permute.xlu0 0
      %240 = vperm.xlu0 %239, %v166
      %v241 = vpop.permute.xlu0 %240
      %244 = vset.pattern.permute.xlu0 0
      %245 = vperm.xlu0 %244, %v167
      %v246 = vpop.permute.xlu0 %245
      %249 = vset.pattern.permute.xlu0 0
      %250 = vperm.xlu0 %249, %v168
      %v251 = vpop.permute.xlu0 %250
      %v254 = vlaneseq
      %v255 = vshrl.u32 %v254, 7
      %v256 = vsub.s32 0, %v255
      %v257 = vrot.slane %v172, %v256
      %v258 = vlaneseq
      %v259 = vshrl.u32 %v258, 7
      %v260 = vsub.s32 1, %v259
      %v261 = vrot.slane %v172, %v260
      %v262 = vlaneseq
      %v263 = vshrl.u32 %v262, 7
      %v264 = vsub.s32 2, %v263
      %v265 = vrot.slane %v172, %v264
      %v269 = vsub.f32 %v176, %v257
      %v270 = vsub.f32 %v176, %v261
      %v271 = vsub.f32 %v176, %v265
      %v272 = vsub.f32 %v181, %v257
      %v273 = vsub.f32 %v181, %v261
      %v274 = vsub.f32 %v181, %v265
      %v275 = vsub.f32 %v186, %v257
      %v276 = vsub.f32 %v186, %v261
      %v277 = vsub.f32 %v186, %v265
      %v278 = vsub.f32 %v191, %v257
      %v279 = vsub.f32 %v191, %v261
      %v280 = vsub.f32 %v191, %v265
      %v281 = vsub.f32 %v196, %v257
      %v282 = vsub.f32 %v196, %v261
      %v283 = vsub.f32 %v196, %v265
      %v284 = vsub.f32 %v201, %v257
      %v285 = vsub.f32 %v201, %v261
      %v286 = vsub.f32 %v201, %v265
      %v287 = vsub.f32 %v206, %v257
      %v288 = vsub.f32 %v206, %v261
      %v289 = vsub.f32 %v206, %v265
      %v290 = vsub.f32 %v211, %v257
      %v291 = vsub.f32 %v211, %v261
      %v292 = vsub.f32 %v211, %v265
      %v293 = vsub.f32 %v216, %v257
      %v294 = vsub.f32 %v216, %v261
      %v295 = vsub.f32 %v216, %v265
      %v296 = vsub.f32 %v221, %v257
      %v297 = vsub.f32 %v221, %v261
      %v298 = vsub.f32 %v221, %v265
      %v299 = vsub.f32 %v226, %v257
      %v300 = vsub.f32 %v226, %v261
      %v301 = vsub.f32 %v226, %v265
      %v302 = vsub.f32 %v231, %v257
      %v303 = vsub.f32 %v231, %v261
      %v304 = vsub.f32 %v231, %v265
      %v305 = vsub.f32 %v236, %v257
      %v306 = vsub.f32 %v236, %v261
      %v307 = vsub.f32 %v236, %v265
      %v308 = vsub.f32 %v241, %v257
      %v309 = vsub.f32 %v241, %v261
      %v310 = vsub.f32 %v241, %v265
      %v311 = vsub.f32 %v246, %v257
      %v312 = vsub.f32 %v246, %v261
      %v313 = vsub.f32 %v246, %v265
      %v314 = vsub.f32 %v251, %v257
      %v315 = vsub.f32 %v251, %v261
      %v316 = vsub.f32 %v251, %v265
      %v317 = vand.u32 2147483647, %v269
      %v318 = vand.u32 2147483647, %v270
      %v319 = vand.u32 2147483647, %v271
      %v320 = vand.u32 2147483647, %v272
      %v321 = vand.u32 2147483647, %v273
      %v322 = vand.u32 2147483647, %v274
      %v323 = vand.u32 2147483647, %v275
      %v324 = vand.u32 2147483647, %v276
      %v325 = vand.u32 2147483647, %v277
      %v326 = vand.u32 2147483647, %v278
      %v327 = vand.u32 2147483647, %v279
      %v328 = vand.u32 2147483647, %v280
      %v329 = vand.u32 2147483647, %v281
      %v330 = vand.u32 2147483647, %v282
      %v331 = vand.u32 2147483647, %v283
      %v332 = vand.u32 2147483647, %v284
      %v333 = vand.u32 2147483647, %v285
      %v334 = vand.u32 2147483647, %v286
      %v335 = vand.u32 2147483647, %v287
      %v336 = vand.u32 2147483647, %v288
      %v337 = vand.u32 2147483647, %v289
      %v338 = vand.u32 2147483647, %v290
      %v339 = vand.u32 2147483647, %v291
      %v340 = vand.u32 2147483647, %v292
      %v341 = vand.u32 2147483647, %v293
      %v342 = vand.u32 2147483647, %v294
      %v343 = vand.u32 2147483647, %v295
      %v344 = vand.u32 2147483647, %v296
      %v345 = vand.u32 2147483647, %v297
      %v346 = vand.u32 2147483647, %v298
      %v347 = vand.u32 2147483647, %v299
      %v348 = vand.u32 2147483647, %v300
      %v349 = vand.u32 2147483647, %v301
      %v350 = vand.u32 2147483647, %v302
      %v351 = vand.u32 2147483647, %v303
      %v352 = vand.u32 2147483647, %v304
      %v353 = vand.u32 2147483647, %v305
      %v354 = vand.u32 2147483647, %v306
      %v355 = vand.u32 2147483647, %v307
      %v356 = vand.u32 2147483647, %v308
      %v357 = vand.u32 2147483647, %v309
      %v358 = vand.u32 2147483647, %v310
      %v359 = vand.u32 2147483647, %v311
      %v360 = vand.u32 2147483647, %v312
      %v361 = vand.u32 2147483647, %v313
      %v362 = vand.u32 2147483647, %v314
      %v363 = vand.u32 2147483647, %v315
      %v364 = vand.u32 2147483647, %v316
      %v365 = vmul.f32 %v317, 0.33333334
      %v366 = vmul.f32 %v318, 0.33333334
      %v367 = vmul.f32 %v319, 0.33333334
      %v368 = vmul.f32 %v320, 0.33333334
      %v369 = vmul.f32 %v321, 0.33333334
      %v370 = vmul.f32 %v322, 0.33333334
      %v371 = vmul.f32 %v323, 0.33333334
      %v372 = vmul.f32 %v324, 0.33333334
      %v373 = vmul.f32 %v325, 0.33333334
      %v374 = vmul.f32 %v326, 0.33333334
      %v375 = vmul.f32 %v327, 0.33333334
      %v376 = vmul.f32 %v328, 0.33333334
      %v377 = vmul.f32 %v329, 0.33333334
      %v378 = vmul.f32 %v330, 0.33333334
      %v379 = vmul.f32 %v331, 0.33333334
      %v380 = vmul.f32 %v332, 0.33333334
      %v381 = vmul.f32 %v333, 0.33333334
      %v382 = vmul.f32 %v334, 0.33333334
      %v383 = vmul.f32 %v335, 0.33333334
      %v384 = vmul.f32 %v336, 0.33333334
      %v385 = vmul.f32 %v337, 0.33333334
      %v386 = vmul.f32 %v338, 0.33333334
      %v387 = vmul.f32 %v339, 0.33333334
      %v388 = vmul.f32 %v340, 0.33333334
      %v389 = vmul.f32 %v341, 0.33333334
      %v390 = vmul.f32 %v342, 0.33333334
      %v391 = vmul.f32 %v343, 0.33333334
      %v392 = vmul.f32 %v344, 0.33333334
      %v393 = vmul.f32 %v345, 0.33333334
      %v394 = vmul.f32 %v346, 0.33333334
      %v395 = vmul.f32 %v347, 0.33333334
      %v396 = vmul.f32 %v348, 0.33333334
      %v397 = vmul.f32 %v349, 0.33333334
      %v398 = vmul.f32 %v350, 0.33333334
      %v399 = vmul.f32 %v351, 0.33333334
      %v400 = vmul.f32 %v352, 0.33333334
      %v401 = vmul.f32 %v353, 0.33333334
      %v402 = vmul.f32 %v354, 0.33333334
      %v403 = vmul.f32 %v355, 0.33333334
      %v404 = vmul.f32 %v356, 0.33333334
      %v405 = vmul.f32 %v357, 0.33333334
      %v406 = vmul.f32 %v358, 0.33333334
      %v407 = vmul.f32 %v359, 0.33333334
      %v408 = vmul.f32 %v360, 0.33333334
      %v409 = vmul.f32 %v361, 0.33333334
      %v410 = vmul.f32 %v362, 0.33333334
      %v411 = vmul.f32 %v363, 0.33333334
      %v412 = vmul.f32 %v364, 0.33333334
      %v413 = vadd.f32 %v365, 1.0
      %v414 = vadd.f32 %v366, 1.0
      %v415 = vadd.f32 %v367, 1.0
      %v416 = vadd.f32 %v368, 1.0
      %v417 = vadd.f32 %v369, 1.0
      %v418 = vadd.f32 %v370, 1.0
      %v419 = vadd.f32 %v371, 1.0
      %v420 = vadd.f32 %v372, 1.0
      %v421 = vadd.f32 %v373, 1.0
      %v422 = vadd.f32 %v374, 1.0
      %v423 = vadd.f32 %v375, 1.0
      %v424 = vadd.f32 %v376, 1.0
      %v425 = vadd.f32 %v377, 1.0
      %v426 = vadd.f32 %v378, 1.0
      %v427 = vadd.f32 %v379, 1.0
      %v428 = vadd.f32 %v380, 1.0
      %v429 = vadd.f32 %v381, 1.0
      %v430 = vadd.f32 %v382, 1.0
      %v431 = vadd.f32 %v383, 1.0
      %v432 = vadd.f32 %v384, 1.0
      %v433 = vadd.f32 %v385, 1.0
      %v434 = vadd.f32 %v386, 1.0
      %v435 = vadd.f32 %v387, 1.0
      %v436 = vadd.f32 %v388, 1.0
      %v437 = vadd.f32 %v389, 1.0
      %v438 = vadd.f32 %v390, 1.0
      %v439 = vadd.f32 %v391, 1.0
      %v440 = vadd.f32 %v392, 1.0
      %v441 = vadd.f32 %v393, 1.0
      %v442 = vadd.f32 %v394, 1.0
      %v443 = vadd.f32 %v395, 1.0
      %v444 = vadd.f32 %v396, 1.0
      %v445 = vadd.f32 %v397, 1.0
      %v446 = vadd.f32 %v398, 1.0
      %v447 = vadd.f32 %v399, 1.0
      %v448 = vadd.f32 %v400, 1.0
      %v449 = vadd.f32 %v401, 1.0
      %v450 = vadd.f32 %v402, 1.0
      %v451 = vadd.f32 %v403, 1.0
      %v452 = vadd.f32 %v404, 1.0
      %v453 = vadd.f32 %v405, 1.0
      %v454 = vadd.f32 %v406, 1.0
      %v455 = vadd.f32 %v407, 1.0
      %v456 = vadd.f32 %v408, 1.0
      %v457 = vadd.f32 %v409, 1.0
      %v458 = vadd.f32 %v410, 1.0
      %v459 = vadd.f32 %v411, 1.0
      %v460 = vadd.f32 %v412, 1.0
      %v461 = vmul.f32 %v317, %v413
      %v462 = vmul.f32 %v318, %v414
      %v463 = vmul.f32 %v319, %v415
      %v464 = vmul.f32 %v320, %v416
      %v465 = vmul.f32 %v321, %v417
      %v466 = vmul.f32 %v322, %v418
      %v467 = vmul.f32 %v323, %v419
      %v468 = vmul.f32 %v324, %v420
      %v469 = vmul.f32 %v325, %v421
      %v470 = vmul.f32 %v326, %v422
      %v471 = vmul.f32 %v327, %v423
      %v472 = vmul.f32 %v328, %v424
      %v473 = vmul.f32 %v329, %v425
      %v474 = vmul.f32 %v330, %v426
      %v475 = vmul.f32 %v331, %v427
      %v476 = vmul.f32 %v332, %v428
      %v477 = vmul.f32 %v333, %v429
      %v478 = vmul.f32 %v334, %v430
      %v479 = vmul.f32 %v335, %v431
      %v480 = vmul.f32 %v336, %v432
      %v481 = vmul.f32 %v337, %v433
      %v482 = vmul.f32 %v338, %v434
      %v483 = vmul.f32 %v339, %v435
      %v484 = vmul.f32 %v340, %v436
      %v485 = vmul.f32 %v341, %v437
      %v486 = vmul.f32 %v342, %v438
      %v487 = vmul.f32 %v343, %v439
      %v488 = vmul.f32 %v344, %v440
      %v489 = vmul.f32 %v345, %v441
      %v490 = vmul.f32 %v346, %v442
      %v491 = vmul.f32 %v347, %v443
      %v492 = vmul.f32 %v348, %v444
      %v493 = vmul.f32 %v349, %v445
      %v494 = vmul.f32 %v350, %v446
      %v495 = vmul.f32 %v351, %v447
      %v496 = vmul.f32 %v352, %v448
      %v497 = vmul.f32 %v353, %v449
      %v498 = vmul.f32 %v354, %v450
      %v499 = vmul.f32 %v355, %v451
      %v500 = vmul.f32 %v356, %v452
      %v501 = vmul.f32 %v357, %v453
      %v502 = vmul.f32 %v358, %v454
      %v503 = vmul.f32 %v359, %v455
      %v504 = vmul.f32 %v360, %v456
      %v505 = vmul.f32 %v361, %v457
      %v506 = vmul.f32 %v362, %v458
      %v507 = vmul.f32 %v363, %v459
      %v508 = vmul.f32 %v364, %v460
      %v509 = vadd.f32 %v461, 1.0
      %v510 = vadd.f32 %v462, 1.0
      %v511 = vadd.f32 %v463, 1.0
      %v512 = vadd.f32 %v464, 1.0
      %v513 = vadd.f32 %v465, 1.0
      %v514 = vadd.f32 %v466, 1.0
      %v515 = vadd.f32 %v467, 1.0
      %v516 = vadd.f32 %v468, 1.0
      %v517 = vadd.f32 %v469, 1.0
      %v518 = vadd.f32 %v470, 1.0
      %v519 = vadd.f32 %v471, 1.0
      %v520 = vadd.f32 %v472, 1.0
      %v521 = vadd.f32 %v473, 1.0
      %v522 = vadd.f32 %v474, 1.0
      %v523 = vadd.f32 %v475, 1.0
      %v524 = vadd.f32 %v476, 1.0
      %v525 = vadd.f32 %v477, 1.0
      %v526 = vadd.f32 %v478, 1.0
      %v527 = vadd.f32 %v479, 1.0
      %v528 = vadd.f32 %v480, 1.0
      %v529 = vadd.f32 %v481, 1.0
      %v530 = vadd.f32 %v482, 1.0
      %v531 = vadd.f32 %v483, 1.0
      %v532 = vadd.f32 %v484, 1.0
      %v533 = vadd.f32 %v485, 1.0
      %v534 = vadd.f32 %v486, 1.0
      %v535 = vadd.f32 %v487, 1.0
      %v536 = vadd.f32 %v488, 1.0
      %v537 = vadd.f32 %v489, 1.0
      %v538 = vadd.f32 %v490, 1.0
      %v539 = vadd.f32 %v491, 1.0
      %v540 = vadd.f32 %v492, 1.0
      %v541 = vadd.f32 %v493, 1.0
      %v542 = vadd.f32 %v494, 1.0
      %v543 = vadd.f32 %v495, 1.0
      %v544 = vadd.f32 %v496, 1.0
      %v545 = vadd.f32 %v497, 1.0
      %v546 = vadd.f32 %v498, 1.0
      %v547 = vadd.f32 %v499, 1.0
      %v548 = vadd.f32 %v500, 1.0
      %v549 = vadd.f32 %v501, 1.0
      %v550 = vadd.f32 %v502, 1.0
      %v551 = vadd.f32 %v503, 1.0
      %v552 = vadd.f32 %v504, 1.0
      %v553 = vadd.f32 %v505, 1.0
      %v554 = vadd.f32 %v506, 1.0
      %v555 = vadd.f32 %v507, 1.0
      %v556 = vadd.f32 %v508, 1.0
      %v557 = vsub.f32 0.0, %v317
      %v558 = vsub.f32 0.0, %v318
      %v559 = vsub.f32 0.0, %v319
      %v560 = vsub.f32 0.0, %v320
      %v561 = vsub.f32 0.0, %v321
      %v562 = vsub.f32 0.0, %v322
      %v563 = vsub.f32 0.0, %v323
      %v564 = vsub.f32 0.0, %v324
      %v565 = vsub.f32 0.0, %v325
      %v566 = vsub.f32 0.0, %v326
      %v567 = vsub.f32 0.0, %v327
      %v568 = vsub.f32 0.0, %v328
      %v569 = vsub.f32 0.0, %v329
      %v570 = vsub.f32 0.0, %v330
      %v571 = vsub.f32 0.0, %v331
      %v572 = vsub.f32 0.0, %v332
      %v573 = vsub.f32 0.0, %v333
      %v574 = vsub.f32 0.0, %v334
      %v575 = vsub.f32 0.0, %v335
      %v576 = vsub.f32 0.0, %v336
      %v577 = vsub.f32 0.0, %v337
      %v578 = vsub.f32 0.0, %v338
      %v579 = vsub.f32 0.0, %v339
      %v580 = vsub.f32 0.0, %v340
      %v581 = vsub.f32 0.0, %v341
      %v582 = vsub.f32 0.0, %v342
      %v583 = vsub.f32 0.0, %v343
      %v584 = vsub.f32 0.0, %v344
      %v585 = vsub.f32 0.0, %v345
      %v586 = vsub.f32 0.0, %v346
      %v587 = vsub.f32 0.0, %v347
      %v588 = vsub.f32 0.0, %v348
      %v589 = vsub.f32 0.0, %v349
      %v590 = vsub.f32 0.0, %v350
      %v591 = vsub.f32 0.0, %v351
      %v592 = vsub.f32 0.0, %v352
      %v593 = vsub.f32 0.0, %v353
      %v594 = vsub.f32 0.0, %v354
      %v595 = vsub.f32 0.0, %v355
      %v596 = vsub.f32 0.0, %v356
      %v597 = vsub.f32 0.0, %v357
      %v598 = vsub.f32 0.0, %v358
      %v599 = vsub.f32 0.0, %v359
      %v600 = vsub.f32 0.0, %v360
      %v601 = vsub.f32 0.0, %v361
      %v602 = vsub.f32 0.0, %v362
      %v603 = vsub.f32 0.0, %v363
      %v604 = vsub.f32 0.0, %v364
      %v605 = vmul.f32 %v557, 1.442695
      %v606 = vpow.pop %v605
      %v607 = vmul.f32 %v558, 1.442695
      %v608 = vpow.pop %v607
      %v609 = vmul.f32 %v559, 1.442695
      %v610 = vpow.pop %v609
      %v611 = vmul.f32 %v560, 1.442695
      %v612 = vpow.pop %v611
      %v613 = vmul.f32 %v561, 1.442695
      %v614 = vpow.pop %v613
      %v615 = vmul.f32 %v562, 1.442695
      %v616 = vpow.pop %v615
      %v617 = vmul.f32 %v563, 1.442695
      %v618 = vpow.pop %v617
      %v619 = vmul.f32 %v564, 1.442695
      %v620 = vpow.pop %v619
      %v621 = vmul.f32 %v565, 1.442695
      %v622 = vpow.pop %v621
      %v623 = vmul.f32 %v566, 1.442695
      %v624 = vpow.pop %v623
      %v625 = vmul.f32 %v567, 1.442695
      %v626 = vpow.pop %v625
      %v627 = vmul.f32 %v568, 1.442695
      %v628 = vpow.pop %v627
      %v629 = vmul.f32 %v569, 1.442695
      %v630 = vpow.pop %v629
      %v631 = vmul.f32 %v570, 1.442695
      %v632 = vpow.pop %v631
      %v633 = vmul.f32 %v571, 1.442695
      %v634 = vpow.pop %v633
      %v635 = vmul.f32 %v572, 1.442695
      %v636 = vpow.pop %v635
      %v637 = vmul.f32 %v573, 1.442695
      %v638 = vpow.pop %v637
      %v639 = vmul.f32 %v574, 1.442695
      %v640 = vpow.pop %v639
      %v641 = vmul.f32 %v575, 1.442695
      %v642 = vpow.pop %v641
      %v643 = vmul.f32 %v576, 1.442695
      %v644 = vpow.pop %v643
      %v645 = vmul.f32 %v577, 1.442695
      %v646 = vpow.pop %v645
      %v647 = vmul.f32 %v578, 1.442695
      %v648 = vpow.pop %v647
      %v649 = vmul.f32 %v579, 1.442695
      %v650 = vpow.pop %v649
      %v651 = vmul.f32 %v580, 1.442695
      %v652 = vpow.pop %v651
      %v653 = vmul.f32 %v581, 1.442695
      %v654 = vpow.pop %v653
      %v655 = vmul.f32 %v582, 1.442695
      %v656 = vpow.pop %v655
      %v657 = vmul.f32 %v583, 1.442695
      %v658 = vpow.pop %v657
      %v659 = vmul.f32 %v584, 1.442695
      %v660 = vpow.pop %v659
      %v661 = vmul.f32 %v585, 1.442695
      %v662 = vpow.pop %v661
      %v663 = vmul.f32 %v586, 1.442695
      %v664 = vpow.pop %v663
      %v665 = vmul.f32 %v587, 1.442695
      %v666 = vpow.pop %v665
      %v667 = vmul.f32 %v588, 1.442695
      %v668 = vpow.pop %v667
      %v669 = vmul.f32 %v589, 1.442695
      %v670 = vpow.pop %v669
      %v671 = vmul.f32 %v590, 1.442695
      %v672 = vpow.pop %v671
      %v673 = vmul.f32 %v591, 1.442695
      %v674 = vpow.pop %v673
      %v675 = vmul.f32 %v592, 1.442695
      %v676 = vpow.pop %v675
      %v677 = vmul.f32 %v593, 1.442695
      %v678 = vpow.pop %v677
      %v679 = vmul.f32 %v594, 1.442695
      %v680 = vpow.pop %v679
      %v681 = vmul.f32 %v595, 1.442695
      %v682 = vpow.pop %v681
      %v683 = vmul.f32 %v596, 1.442695
      %v684 = vpow.pop %v683
      %v685 = vmul.f32 %v597, 1.442695
      %v686 = vpow.pop %v685
      %v687 = vmul.f32 %v598, 1.442695
      %v688 = vpow.pop %v687
      %v689 = vmul.f32 %v599, 1.442695
      %v690 = vpow.pop %v689
      %v691 = vmul.f32 %v600, 1.442695
      %v692 = vpow.pop %v691
      %v693 = vmul.f32 %v601, 1.442695
      %v694 = vpow.pop %v693
      %v695 = vmul.f32 %v602, 1.442695
      %v696 = vpow.pop %v695
      %v697 = vmul.f32 %v603, 1.442695
      %v698 = vpow.pop %v697
      %v699 = vmul.f32 %v604, 1.442695
      %v700 = vpow.pop %v699
      %v701 = vmul.f32 %v509, %v606
      %v702 = vmul.f32 %v510, %v608
      %v703 = vmul.f32 %v511, %v610
      %v704 = vmul.f32 %v512, %v612
      %v705 = vmul.f32 %v513, %v614
      %v706 = vmul.f32 %v514, %v616
      %v707 = vmul.f32 %v515, %v618
      %v708 = vmul.f32 %v516, %v620
      %v709 = vmul.f32 %v517, %v622
      %v710 = vmul.f32 %v518, %v624
      %v711 = vmul.f32 %v519, %v626
      %v712 = vmul.f32 %v520, %v628
      %v713 = vmul.f32 %v521, %v630
      %v714 = vmul.f32 %v522, %v632
      %v715 = vmul.f32 %v523, %v634
      %v716 = vmul.f32 %v524, %v636
      %v717 = vmul.f32 %v525, %v638
      %v718 = vmul.f32 %v526, %v640
      %v719 = vmul.f32 %v527, %v642
      %v720 = vmul.f32 %v528, %v644
      %v721 = vmul.f32 %v529, %v646
      %v722 = vmul.f32 %v530, %v648
      %v723 = vmul.f32 %v531, %v650
      %v724 = vmul.f32 %v532, %v652
      %v725 = vmul.f32 %v533, %v654
      %v726 = vmul.f32 %v534, %v656
      %v727 = vmul.f32 %v535, %v658
      %v728 = vmul.f32 %v536, %v660
      %v729 = vmul.f32 %v537, %v662
      %v730 = vmul.f32 %v538, %v664
      %v731 = vmul.f32 %v539, %v666
      %v732 = vmul.f32 %v540, %v668
      %v733 = vmul.f32 %v541, %v670
      %v734 = vmul.f32 %v542, %v672
      %v735 = vmul.f32 %v543, %v674
      %v736 = vmul.f32 %v544, %v676
      %v737 = vmul.f32 %v545, %v678
      %v738 = vmul.f32 %v546, %v680
      %v739 = vmul.f32 %v547, %v682
      %v740 = vmul.f32 %v548, %v684
      %v741 = vmul.f32 %v549, %v686
      %v742 = vmul.f32 %v550, %v688
      %v743 = vmul.f32 %v551, %v690
      %v744 = vmul.f32 %v552, %v692
      %v745 = vmul.f32 %v553, %v694
      %v746 = vmul.f32 %v554, %v696
      %v747 = vmul.f32 %v555, %v698
      %v748 = vmul.f32 %v556, %v700
      %749 = vst [vmem:[%s147] sm:$0xff] %v701
      %750 = vst [vmem:[%s147 + $0x8] sm:$0xff] %v702
      %751 = vst [vmem:[%s147 + $0x10] sm:$0xff] %v703
      %752 = vst [vmem:[%s147 + $0x18] sm:$0xff] %v704
      %753 = vst [vmem:[%s147 + $0x20] sm:$0xff] %v705
      %754 = vst [vmem:[%s147 + $0x28] sm:$0xff] %v706
      %755 = vst [vmem:[%s147 + $0x30] sm:$0xff] %v707
      %756 = vst [vmem:[%s147 + $0x38] sm:$0xff] %v708
      %757 = vst [vmem:[%s147 + $0x40] sm:$0xff] %v709
      %758 = vst [vmem:[%s147 + $0x48] sm:$0xff] %v710
      %759 = vst [vmem:[%s147 + $0x50] sm:$0xff] %v711
      %760 = vst [vmem:[%s147 + $0x58] sm:$0xff] %v712
      %761 = vst [vmem:[%s147 + $0x60] sm:$0xff] %v713
      %762 = vst [vmem:[%s147 + $0x68] sm:$0xff] %v714
      %763 = vst [vmem:[%s147 + $0x70] sm:$0xff] %v715
      %764 = vst [vmem:[%s147 + $0x78] sm:$0xff] %v716
      %765 = vst [vmem:[%s147 + $0x80] sm:$0xff] %v717
      %766 = vst [vmem:[%s147 + $0x88] sm:$0xff] %v718
      %767 = vst [vmem:[%s147 + $0x90] sm:$0xff] %v719
      %768 = vst [vmem:[%s147 + $0x98] sm:$0xff] %v720
      %769 = vst [vmem:[%s147 + $0xa0] sm:$0xff] %v721
      %770 = vst [vmem:[%s147 + $0xa8] sm:$0xff] %v722
      %771 = vst [vmem:[%s147 + $0xb0] sm:$0xff] %v723
      %772 = vst [vmem:[%s147 + $0xb8] sm:$0xff] %v724
      %773 = vst [vmem:[%s147 + $0xc0] sm:$0xff] %v725
      %774 = vst [vmem:[%s147 + $0xc8] sm:$0xff] %v726
      %775 = vst [vmem:[%s147 + $0xd0] sm:$0xff] %v727
      %776 = vst [vmem:[%s147 + $0xd8] sm:$0xff] %v728
      %777 = vst [vmem:[%s147 + $0xe0] sm:$0xff] %v729
      %778 = vst [vmem:[%s147 + $0xe8] sm:$0xff] %v730
      %779 = vst [vmem:[%s147 + $0xf0] sm:$0xff] %v731
      %780 = vst [vmem:[%s147 + $0xf8] sm:$0xff] %v732
      %781 = vst [vmem:[%s147 + $0x100] sm:$0xff] %v733
      %782 = vst [vmem:[%s147 + $0x108] sm:$0xff] %v734
      %783 = vst [vmem:[%s147 + $0x110] sm:$0xff] %v735
      %784 = vst [vmem:[%s147 + $0x118] sm:$0xff] %v736
      %785 = vst [vmem:[%s147 + $0x120] sm:$0xff] %v737
      %786 = vst [vmem:[%s147 + $0x128] sm:$0xff] %v738
      %787 = vst [vmem:[%s147 + $0x130] sm:$0xff] %v739
      %788 = vst [vmem:[%s147 + $0x138] sm:$0xff] %v740
      %789 = vst [vmem:[%s147 + $0x140] sm:$0xff] %v741
      %790 = vst [vmem:[%s147 + $0x148] sm:$0xff] %v742
      %791 = vst [vmem:[%s147 + $0x150] sm:$0xff] %v743
      %792 = vst [vmem:[%s147 + $0x158] sm:$0xff] %v744
      %793 = vst [vmem:[%s147 + $0x160] sm:$0xff] %v745
      %794 = vst [vmem:[%s147 + $0x168] sm:$0xff] %v746
      %795 = vst [vmem:[%s147 + $0x170] sm:$0xff] %v747
      %796 = vst [vmem:[%s147 + $0x178] sm:$0xff] %v748
      %s797 = smul.u32 16, %s17
      %s798 = smul.u32 3, %s18
      %p799 = scmp.lt.s32.totalorder %s797, 31
      %s800 = scalar_select %p799, %s797, 31
      %p801 = scmp.lt.s32.totalorder %s798, 2
      %s802 = scalar_select %p801, %s798, 2
      %s803 = smul.addr %s800, 3
      %s804 = sadd.s32 %s802, %s803
      %s805 = smul.addr %s804, 8
      %s806 = scalar_lea.vmem %s2, %s805
      // Predicated region
      $region29: #{tpu_custom_call.1} parent=27 // pred_check
        %p807 = pneg %p87
      $region30: #{tpu_custom_call.1} parent=27 // pred_check_branch
        %809 = sbr.rel (%p807) target = $region32
      $region31: #{tpu_custom_call.1} parent=27 // pred_region
        %s810 = smul.u32 16, %s17
        %s811 = smul.u32 3, %s18
      $region32: #{tpu_custom_call.1} parent=27 // pred_fallthru
        _
    $region28: #{tpu_custom_call.1} parent=5 // pred_fallthru
      _
    %p812 = scmp.le.s32.totalorder 2, %s8
    // Predicated region
    $region33: #{tpu_custom_call.1} parent=5 // pred_check
      %p813 = pneg %p812
    $region34: #{tpu_custom_call.1} parent=5 // pred_check_branch
      %815 = sbr.rel (%p813) target = $region36
    $region35: #{tpu_custom_call.1} parent=5 // pred_region
      %s816 = ssub.s32 %s8, 2
      // Predicated region
      $region37: #{tpu_custom_call.1} parent=35 // pred_check
        %p817 = pneg %p93
      $region38: #{tpu_custom_call.1} parent=35 // pred_check_branch
        %819 = sbr.rel (%p817) target = $region40
      $region39: #{tpu_custom_call.1} parent=35 // pred_region
        %s820 = smul.u32 16, %s19
        %s821 = smul.u32 3, %s20
        %p822 = scmp.lt.s32.totalorder %s820, 31
        %s823 = scalar_select %p822, %s820, 31
        %p824 = scmp.lt.s32.totalorder %s821, 2
        %s825 = scalar_select %p824, %s821, 2
        %s826 = smul.addr %s823, 3
        %s827 = sadd.s32 %s825, %s826
        %s828 = smul.addr %s827, 8
        %s829 = scalar_lea.vmem %s2, %s828
      $region40: #{tpu_custom_call.1} parent=35 // pred_fallthru
        _
    $region36: #{tpu_custom_call.1} parent=5 // pred_fallthru
      _
  $region6: #{tpu_custom_call.1} parent=0 // loop_footer
    %s12 = sadd.s32 1, %s8
  $region7: #{tpu_custom_call.1} parent=0 // loop_footer_branch
    %7 = sbr.rel target = $region3
  $region8: #{tpu_custom_call.1} parent=0 // loop_exit
    _

</llo_original>
